<compile_context>
chip_gen: v5e
topology: v5e:2x2
jax: 0.10.0
libtpu: 0.0.40
codegen_flags: <defaults>
</compile_context>

<pallas_src>
import functools

import jax
import jax.numpy as jnp
from jax.experimental import pallas as pl
from jax.experimental.pallas import tpu as pltpu

# YCbCr gray coefficients (deterministic "parameter" from __init__).
_GRAY_COEFFS = (65.738 / 256.0, 129.057 / 256.0, 25.064 / 256.0)


def _round_up(x, m):
    return (x + m - 1) // m * m


def _psnr_partial_kernel(sr_ref, hr_ref, out_ref, *, tile_h, height, width,
                         shave, pixel_range, inv_pixel_range, weights):
    """Per batch image: accumulate sum over valid pixels of gray-error^2."""
    h_idx = pl.program_id(1)

    @pl.when(h_idx == 0)
    def _():
        out_ref[...] = jnp.zeros_like(out_ref)

    # Mask for the shaved border and the (possibly ragged) last row tile.
    rows = jax.lax.broadcasted_iota(jnp.int32, (tile_h, width), 0) + h_idx * tile_h
    mask = (rows >= shave) & (rows < height - shave)
    if shave:
        cols = jax.lax.broadcasted_iota(jnp.int32, (tile_h, width), 1)
        mask = mask & (cols >= shave) & (cols < width - shave)

    # Stream the 3 channels: only one (TILE_H, W) sr/hr/diff live at a time.
    gray = None
    for c in range(3):
        s = sr_ref[c].astype(jnp.float32)
        h = hr_ref[c].astype(jnp.float32)
        # quantize(sr): mul/clip/round; /pixel_range, /rgb_range and the gray
        # coefficient are folded into reciprocal multiplies (~1 ulp vs the
        # reference's true divisions; harmless for PSNR).
        sq = jnp.round(jnp.clip(s * pixel_range, 0.0, 255.0)) * inv_pixel_range
        contrib = (sq - h) * weights[c]
        gray = contrib if gray is None else gray + contrib

    sq_err = jnp.where(mask, gray * gray, 0.0)
    # Fold (TILE_H, W) -> (8, W): pure vreg adds (major-axis reduce, no XLU),
    # keeping the resident accumulator (= the output block) tiny.
    out_ref[...] += jnp.sum(sq_err.reshape(tile_h // 8, 8, width), axis=0)


def _psnr_ycbcr_impl(sr, hr, scale, rgb_range):
    assert sr.shape == hr.shape and sr.ndim == 4 and sr.shape[1] == 3, \
        "expect NCHW with C=3"
    n, _, height, width = sr.shape
    scale = int(scale)
    rgb_range = float(rgb_range)

    # TODO(synk): PyTorch's `if hr.size == 1: return 0` compares a bound method
    # to an int and is always False, so it is intentionally omitted.

    shave = scale if scale != 1 else 0
    if shave:
        assert height > 2 * shave and width > 2 * shave
    num_valid = n * (height - 2 * shave) * (width - 2 * shave)

    itemsize = max(jnp.dtype(sr.dtype).itemsize, jnp.dtype(hr.dtype).itemsize)
    # One buffer-set = both inputs' blocks = 2 * 3 * tile_h * W * itemsize bytes.
    bytes_per_row = 2 * 3 * width * itemsize
    # ~8 MiB per buffer-set -> <= ~16-17 MiB with double buffering (v7x-safe).
    tile_h_vmem = max(8, (8 * 1024 * 1024) // bytes_per_row // 8 * 8)
    # Keep at least ~4 row tiles so DMA/compute double-buffering can overlap.
    tile_h_steps = max(8, _round_up(pl.cdiv(height, 4), 8))
    tile_h = int(min(tile_h_vmem, tile_h_steps))
    num_h_tiles = pl.cdiv(height, tile_h)

    kernel = functools.partial(
        _psnr_partial_kernel,
        tile_h=tile_h, height=height, width=width, shave=shave,
        pixel_range=255.0 / rgb_range,
        inv_pixel_range=rgb_range / 255.0,
        weights=tuple(c / rgb_range for c in _GRAY_COEFFS),
    )

    partials = pl.pallas_call(
        kernel,
        out_shape=jax.ShapeDtypeStruct((n, 8, width), jnp.float32),
        grid_spec=pltpu.PrefetchScalarGridSpec(
            num_scalar_prefetch=0,
            grid=(n, num_h_tiles),
            in_specs=[
                pl.BlockSpec((None, 3, tile_h, width), lambda b, i: (b, 0, i, 0)),
                pl.BlockSpec((None, 3, tile_h, width), lambda b, i: (b, 0, i, 0)),
            ],
            out_specs=pl.BlockSpec((None, 8, width), lambda b, i: (b, 0, 0)),
        ),
        compiler_params=pltpu.CompilerParams(
            dimension_semantics=("parallel", "arbitrary"),
            vmem_limit_bytes=40 * 1024 * 1024,
        ),
    )(sr, hr)

    # Tiny finalize: cross-lane/row reduce of the (N, 8, W) partials + log.
    mse = jnp.sum(partials) / float(num_valid)
    return -10.0 * jnp.log10(mse)


psnr_ycbcr = jax.jit(_psnr_ycbcr_impl, static_argnums=(2, 3))


def psnr_ycbcr_ref(sr, hr, scale, rgb_range):
    """Pure-JAX reference mirroring the PyTorch module."""
    pixel_range = 255.0 / rgb_range
    srq = jnp.round(jnp.clip(sr * pixel_range, 0.0, 255.0)) / pixel_range
    coeffs = jnp.array(_GRAY_COEFFS, jnp.float32).reshape(1, 3, 1, 1)
    diff = (srq.astype(jnp.float32) - hr.astype(jnp.float32)) / rgb_range
    gray = (diff * coeffs).sum(1)
    if scale == 1:
        valid = gray
    else:
        shave = scale
        valid = gray[..., shave:-shave, shave:-shave]
    mse = jnp.mean(valid ** 2)
    return -10.0 * jnp.log10(mse)


if __name__ == "__main__":
    key = jax.random.PRNGKey(0)
    k1, k2 = jax.random.split(key)
    n, c, h, w = 2, 3, 16, 16
    rgb_range = 1.0
    hr = jax.random.uniform(k1, (n, c, h, w), jnp.float32, 0.0, rgb_range)
    noise = 0.05 * jax.random.normal(k2, (n, c, h, w), jnp.float32)
    sr = jnp.clip(hr + noise, 0.0, rgb_range)

    for scale in (4, 1):
        out = jax.block_until_ready(psnr_ycbcr(sr, hr, scale, rgb_range))
        ref = jax.block_until_ready(psnr_ycbcr_ref(sr, hr, scale, rgb_range))
        assert jnp.allclose(out, ref, rtol=1e-4, atol=1e-3), (scale, out, ref)

    print("KERNEL_OK")
</pallas_src>

<mosaic_0001>
module attributes {stable_mosaic.version = 11 : i64} {
  func.func @_psnr_partial_kernel(%arg0: i32, %arg1: i32, %arg2: memref<1x3x8x16xf32, #tpu.memory_space<vmem>>, %arg3: memref<1x3x8x16xf32, #tpu.memory_space<vmem>>, %arg4: memref<1x8x16xf32, #tpu.memory_space<vmem>>) attributes {dimension_semantics = [#tpu.dimension_semantics<parallel>, #tpu.dimension_semantics<arbitrary>], iteration_bounds = array<i64: 2, 2>, scalar_prefetch = 0 : i64, scratch_operands = 0 : i64, tpu.core_type = #tpu.core_type<tc>, window_params = [{transform_indices = @transform_0, window_bounds = array<i64: 1, 3, 8, 16>}, {transform_indices = @transform_1, window_bounds = array<i64: 1, 3, 8, 16>}, {transform_indices = @transform_2, window_bounds = array<i64: 1, 8, 16>}]} {
    %c0_i32 = arith.constant 0 : i32
    %0 = arith.cmpi eq, %arg1, %c0_i32 : i32
    %1 = arith.extui %0 : i1 to i32
    %c0_i32_0 = arith.constant 0 : i32
    %2 = arith.cmpi ne, %1, %c0_i32_0 : i32
    scf.if %2 {
      %cst_46 = arith.constant 0.000000e+00 : f32
      %80 = vector.broadcast %cst_46 : f32 to vector<8x16xf32>
      %c0_47 = arith.constant 0 : index
      %c0_48 = arith.constant 0 : index
      %c0_49 = arith.constant 0 : index
      %81 = vector.load %arg4[%c0_47, %c0_48, %c0_49] : memref<1x8x16xf32, #tpu.memory_space<vmem>>, vector<1x8x16xf32>
      %82 = vector.shape_cast %81 : vector<1x8x16xf32> to vector<8x16xf32>
      %83 = vector.shape_cast %80 : vector<8x16xf32> to vector<1x8x16xf32>
      tpu.vector_store %arg4[%c0_47, %c0_48, %c0_49], %83 {strides = array<i32>} : memref<1x8x16xf32, #tpu.memory_space<vmem>>, vector<1x8x16xf32>,
    } else {
    }
    %3 = tpu.iota {dimensions = array<i32: 0>} : vector<8x16xi32>
    %c8_i32 = arith.constant 8 : i32
    %4 = arith.muli %arg1, %c8_i32 : i32
    %5 = vector.broadcast %4 : i32 to vector<8x16xi32>
    %6 = arith.addi %3, %5 : vector<8x16xi32>
    %c4_i32 = arith.constant 4 : i32
    %7 = vector.broadcast %c4_i32 : i32 to vector<8x16xi32>
    %8 = arith.cmpi sge, %6, %7 : vector<8x16xi32>
    %c12_i32 = arith.constant 12 : i32
    %9 = vector.broadcast %c12_i32 : i32 to vector<8x16xi32>
    %10 = arith.cmpi slt, %6, %9 : vector<8x16xi32>
    %11 = arith.andi %8, %10 : vector<8x16xi1>
    %12 = tpu.iota {dimensions = array<i32: 1>} : vector<8x16xi32>
    %c4_i32_1 = arith.constant 4 : i32
    %13 = vector.broadcast %c4_i32_1 : i32 to vector<8x16xi32>
    %14 = arith.cmpi sge, %12, %13 : vector<8x16xi32>
    %15 = arith.andi %11, %14 : vector<8x16xi1>
    %c12_i32_2 = arith.constant 12 : i32
    %16 = vector.broadcast %c12_i32_2 : i32 to vector<8x16xi32>
    %17 = arith.cmpi slt, %12, %16 : vector<8x16xi32>
    %18 = arith.andi %15, %17 : vector<8x16xi1>
    %c0 = arith.constant 0 : index
    %c0_3 = arith.constant 0 : index
    %c0_4 = arith.constant 0 : index
    %c0_5 = arith.constant 0 : index
    %19 = vector.load %arg2[%c0, %c0_3, %c0_4, %c0_5] : memref<1x3x8x16xf32, #tpu.memory_space<vmem>>, vector<1x1x8x16xf32>
    %20 = vector.shape_cast %19 : vector<1x1x8x16xf32> to vector<8x16xf32>
    %c0_6 = arith.constant 0 : index
    %c0_7 = arith.constant 0 : index
    %c0_8 = arith.constant 0 : index
    %c0_9 = arith.constant 0 : index
    %21 = vector.load %arg3[%c0_6, %c0_7, %c0_8, %c0_9] : memref<1x3x8x16xf32, #tpu.memory_space<vmem>>, vector<1x1x8x16xf32>
    %22 = vector.shape_cast %21 : vector<1x1x8x16xf32> to vector<8x16xf32>
    %cst = arith.constant 2.550000e+02 : f32
    %23 = vector.broadcast %cst : f32 to vector<8x16xf32>
    %24 = arith.mulf %20, %23 : vector<8x16xf32>
    %cst_10 = arith.constant 0.000000e+00 : f32
    %cst_11 = arith.constant 2.550000e+02 : f32
    %25 = vector.broadcast %cst_10 : f32 to vector<8x16xf32>
    %26 = arith.maximumf %25, %24 : vector<8x16xf32>
    %27 = vector.broadcast %cst_11 : f32 to vector<8x16xf32>
    %28 = arith.minimumf %27, %26 : vector<8x16xf32>
    %29 = math.roundeven %28 : vector<8x16xf32>
    %cst_12 = arith.constant 0.00392156886 : f32
    %30 = vector.broadcast %cst_12 : f32 to vector<8x16xf32>
    %31 = arith.mulf %29, %30 : vector<8x16xf32>
    %32 = arith.subf %31, %22 : vector<8x16xf32>
    %cst_13 = arith.constant 0.256789058 : f32
    %33 = vector.broadcast %cst_13 : f32 to vector<8x16xf32>
    %34 = arith.mulf %32, %33 : vector<8x16xf32>
    %c0_14 = arith.constant 0 : index
    %c1 = arith.constant 1 : index
    %c0_15 = arith.constant 0 : index
    %c0_16 = arith.constant 0 : index
    %35 = vector.load %arg2[%c0_14, %c1, %c0_15, %c0_16] : memref<1x3x8x16xf32, #tpu.memory_space<vmem>>, vector<1x1x8x16xf32>
    %36 = vector.shape_cast %35 : vector<1x1x8x16xf32> to vector<8x16xf32>
    %c0_17 = arith.constant 0 : index
    %c1_18 = arith.constant 1 : index
    %c0_19 = arith.constant 0 : index
    %c0_20 = arith.constant 0 : index
    %37 = vector.load %arg3[%c0_17, %c1_18, %c0_19, %c0_20] : memref<1x3x8x16xf32, #tpu.memory_space<vmem>>, vector<1x1x8x16xf32>
    %38 = vector.shape_cast %37 : vector<1x1x8x16xf32> to vector<8x16xf32>
    %cst_21 = arith.constant 2.550000e+02 : f32
    %39 = vector.broadcast %cst_21 : f32 to vector<8x16xf32>
    %40 = arith.mulf %36, %39 : vector<8x16xf32>
    %cst_22 = arith.constant 0.000000e+00 : f32
    %cst_23 = arith.constant 2.550000e+02 : f32
    %41 = vector.broadcast %cst_22 : f32 to vector<8x16xf32>
    %42 = arith.maximumf %41, %40 : vector<8x16xf32>
    %43 = vector.broadcast %cst_23 : f32 to vector<8x16xf32>
    %44 = arith.minimumf %43, %42 : vector<8x16xf32>
    %45 = math.roundeven %44 : vector<8x16xf32>
    %cst_24 = arith.constant 0.00392156886 : f32
    %46 = vector.broadcast %cst_24 : f32 to vector<8x16xf32>
    %47 = arith.mulf %45, %46 : vector<8x16xf32>
    %48 = arith.subf %47, %38 : vector<8x16xf32>
    %cst_25 = arith.constant 0.504128933 : f32
    %49 = vector.broadcast %cst_25 : f32 to vector<8x16xf32>
    %50 = arith.mulf %48, %49 : vector<8x16xf32>
    %51 = arith.addf %34, %50 : vector<8x16xf32>
    %c0_26 = arith.constant 0 : index
    %c2 = arith.constant 2 : index
    %c0_27 = arith.constant 0 : index
    %c0_28 = arith.constant 0 : index
    %52 = vector.load %arg2[%c0_26, %c2, %c0_27, %c0_28] : memref<1x3x8x16xf32, #tpu.memory_space<vmem>>, vector<1x1x8x16xf32>
    %53 = vector.shape_cast %52 : vector<1x1x8x16xf32> to vector<8x16xf32>
    %c0_29 = arith.constant 0 : index
    %c2_30 = arith.constant 2 : index
    %c0_31 = arith.constant 0 : index
    %c0_32 = arith.constant 0 : index
    %54 = vector.load %arg3[%c0_29, %c2_30, %c0_31, %c0_32] : memref<1x3x8x16xf32, #tpu.memory_space<vmem>>, vector<1x1x8x16xf32>
    %55 = vector.shape_cast %54 : vector<1x1x8x16xf32> to vector<8x16xf32>
    %cst_33 = arith.constant 2.550000e+02 : f32
    %56 = vector.broadcast %cst_33 : f32 to vector<8x16xf32>
    %57 = arith.mulf %53, %56 : vector<8x16xf32>
    %cst_34 = arith.constant 0.000000e+00 : f32
    %cst_35 = arith.constant 2.550000e+02 : f32
    %58 = vector.broadcast %cst_34 : f32 to vector<8x16xf32>
    %59 = arith.maximumf %58, %57 : vector<8x16xf32>
    %60 = vector.broadcast %cst_35 : f32 to vector<8x16xf32>
    %61 = arith.minimumf %60, %59 : vector<8x16xf32>
    %62 = math.roundeven %61 : vector<8x16xf32>
    %cst_36 = arith.constant 0.00392156886 : f32
    %63 = vector.broadcast %cst_36 : f32 to vector<8x16xf32>
    %64 = arith.mulf %62, %63 : vector<8x16xf32>
    %65 = arith.subf %64, %55 : vector<8x16xf32>
    %cst_37 = arith.constant 0.0979062467 : f32
    %66 = vector.broadcast %cst_37 : f32 to vector<8x16xf32>
    %67 = arith.mulf %65, %66 : vector<8x16xf32>
    %68 = arith.addf %51, %67 : vector<8x16xf32>
    %69 = arith.mulf %68, %68 : vector<8x16xf32>
    %cst_38 = arith.constant 0.000000e+00 : f32
    %70 = vector.broadcast %cst_38 : f32 to vector<8x16xf32>
    %71 = arith.select %18, %69, %70 : vector<8x16xi1>, vector<8x16xf32>
    %c0_39 = arith.constant 0 : index
    %c0_40 = arith.constant 0 : index
    %c0_41 = arith.constant 0 : index
    %72 = vector.load %arg4[%c0_39, %c0_40, %c0_41] : memref<1x8x16xf32, #tpu.memory_space<vmem>>, vector<1x8x16xf32>
    %73 = vector.shape_cast %72 : vector<1x8x16xf32> to vector<8x16xf32>
    %74 = vector.shape_cast %71 : vector<8x16xf32> to vector<1x8x16xf32>
    %cst_42 = arith.constant dense<0.000000e+00> : vector<8x16xf32>
    %75 = vector.multi_reduction <add>, %74, %cst_42 [0] : vector<1x8x16xf32> to vector<8x16xf32>
    %76 = arith.addf %73, %75 : vector<8x16xf32>
    %c0_43 = arith.constant 0 : index
    %c0_44 = arith.constant 0 : index
    %c0_45 = arith.constant 0 : index
    %77 = vector.load %arg4[%c0_43, %c0_44, %c0_45] : memref<1x8x16xf32, #tpu.memory_space<vmem>>, vector<1x8x16xf32>
    %78 = vector.shape_cast %77 : vector<1x8x16xf32> to vector<8x16xf32>
    %79 = vector.shape_cast %76 : vector<8x16xf32> to vector<1x8x16xf32>
    tpu.vector_store %arg4[%c0_43, %c0_44, %c0_45], %79 {strides = array<i32>} : memref<1x8x16xf32, #tpu.memory_space<vmem>>, vector<1x8x16xf32>,
    return
  }
  func.func @transform_0(%arg0: i32, %arg1: i32) -> (i32, i32, i32, i32) {
    %c0_i32 = arith.constant 0 : i32
    %c0_i32_0 = arith.constant 0 : i32
    %c0_i32_1 = arith.constant 0 : i32
    return %arg0, %c0_i32, %arg1, %c0_i32_0 : i32, i32, i32, i32
  }
  func.func @transform_1(%arg0: i32, %arg1: i32) -> (i32, i32, i32, i32) {
    %c0_i32 = arith.constant 0 : i32
    %c0_i32_0 = arith.constant 0 : i32
    %c0_i32_1 = arith.constant 0 : i32
    return %arg0, %c0_i32, %arg1, %c0_i32_0 : i32, i32, i32, i32
  }
  func.func @transform_2(%arg0: i32, %arg1: i32) -> (i32, i32, i32) {
    %c0_i32 = arith.constant 0 : i32
    %c0_i32_0 = arith.constant 0 : i32
    %c0_i32_1 = arith.constant 0 : i32
    return %arg0, %c0_i32, %c0_i32_0 : i32, i32, i32
  }
}

</mosaic_0001>

<llo_original>
// kernel: _psnr_ycbcr_impl.1
$region0: #{_psnr_ycbcr_impl.1}
  #allocation0 [shape = 'u32[]', space=smem, size = 0x4, offset = 0x4, fixed_abs, tag = 'smem constant byte address 0x4 - core index']
  #allocation1 [shape = 'u32[72,128]{1,0:T(1,128)}', space=vmem, size = 0x9000, scoped, tag = 'internal scratch']
  %s0 = inlined_call_operand.hbm [shape: f32[2,3,16,16], index: 0, kind: input, shape index: {}]
  %s1 = inlined_call_operand.hbm [shape: f32[2,3,16,16], index: 1, kind: input, shape index: {}]
  %s2 = inlined_call_operand.vmem [shape: f32[2,8,16], index: 2, kind: output, shape index: {}]
  %s3 = sld [smem:[#allocation0]]
  $region53: #{_psnr_ycbcr_impl.1} parent=0
    _
  %s5 = ssub.s32 1, %s3
  %s6 = scalar_select 0, %s5, %s3
  $region1: #{_psnr_ycbcr_impl.1} parent=0
    #allocation2 [shape = 'u8[24576]{0}', space=vmem, size = 0x6000, scoped, tag = 'input window, operand 0']
    #allocation3 [shape = 's32[2]{0}', space=sflag, size = 0x8, scoped, tag = 'scoped memory for _psnr_ycbcr_impl.1']
    #allocation4 [shape = 'u8[24576]{0}', space=vmem, size = 0x6000, scoped, tag = 'input window, operand 1']
    #allocation5 [shape = 's32[2]{0}', space=sflag, size = 0x8, scoped, tag = 'scoped memory for _psnr_ycbcr_impl.1']
    %7 = vsyncpa [#allocation3], 0
    %s8 = scalar_lea.sflag [#allocation3], 1
    %9 = vsyncpa %s8, 0
    %10 = vsyncpa [#allocation5], 0
    %s11 = scalar_lea.sflag [#allocation5], 1
    %12 = vsyncpa %s11, 0
    loop: start=0, step=1, limit=6
    $region2: #{_psnr_ycbcr_impl.1} parent=1 // loop_pre_header
      _
    $region3: #{_psnr_ycbcr_impl.1} parent=1 // loop_header
      %s14 = sphi 0, %s18
      %p15 = scmp.ge.s32.totalorder %s14, 6
      %s21 = sphi 0, %s33
      %s22 = sphi 0, %s29
      %s23 = sphi 0, %s21
      %s24 = sphi 0, %s22
      %s25 = sphi 0, %s23
      %s26 = sphi 0, %s24
      %s38 = sphi 0, %s40
      %s41 = sphi 0, %s38
      %s42 = sphi 0, %s41
      %s58 = sphi 0, %s42
      %s66 = sphi 0, %s68
      %s69 = sphi 0, %s66
      %s70 = sphi 0, %s69
      %s86 = sphi 0, %s70
      %s92 = sphi 0, %s94
      %s95 = sphi 0, %s92
      %s96 = sphi 0, %s95
      %s112 = sphi 0, %s96
    $region4: #{_psnr_ycbcr_impl.1} parent=1 // loop_header_branch
      %17 = sbr.rel (%p15) target = $region8
    $region5: #{_psnr_ycbcr_impl.1} parent=1 // loop_body
      %s19 = ssub.s32 %s14, 1
      %s20 = ssub.s32 %s14, 2
      %s27 = sadd.s32 1, %s22
      %p28 = scmp.ge.s32.totalorder %s27, 2
      %s29 = scalar_select %p28, 0, %s27
      %s30 = sadd.s32 1, %s21
      %s31 = scalar_select %p28, %s30, %s21
      %p32 = scmp.ge.s32.totalorder %s31, 2
      %s33 = scalar_select %p32, 0, %s31
      %s34 = ssub.s32 %s21, %s33
      %s35 = ssub.s32 %s22, %s29
      %s36 = sor.u32 %s34, %s35
      %p37 = scmp.eq.s32.totalorder %s36, 0
      %s39 = sadd.s32 %s38, 1
      %s40 = scalar_select %p37, %s38, %s39
      %p43 = pneg %p37
      %p44 = scmp.eq.s32.totalorder %s14, 3
      %p45 = por %p43, %p44
      %p46 = scmp.ne.s32.totalorder %s38, %s41
      %p47 = scmp.eq.s32.totalorder %s14, 0
      %p48 = por %p46, %p47
      %p49 = scmp.ne.s32.totalorder %s38, %s41
      %p50 = scmp.eq.s32.totalorder %s19, 3
      %p51 = por %p49, %p50
      %p52 = scmp.ne.s32.totalorder %s41, %s42
      %p53 = scmp.eq.s32.totalorder %s19, 0
      %p54 = por %p52, %p53
      %p55 = scmp.ne.s32.totalorder %s41, %s42
      %p56 = scmp.eq.s32.totalorder %s20, 3
      %p57 = por %p55, %p56
      %p59 = scmp.ne.s32.totalorder %s42, %s58
      %p60 = scmp.eq.s32.totalorder %s20, 0
      %p61 = por %p59, %p60
      %s62 = ssub.s32 %s21, %s33
      %s63 = ssub.s32 %s22, %s29
      %s64 = sor.u32 %s62, %s63
      %p65 = scmp.eq.s32.totalorder %s64, 0
      %s67 = sadd.s32 %s66, 1
      %s68 = scalar_select %p65, %s66, %s67
      %p71 = pneg %p65
      %p72 = scmp.eq.s32.totalorder %s14, 3
      %p73 = por %p71, %p72
      %p74 = scmp.ne.s32.totalorder %s66, %s69
      %p75 = scmp.eq.s32.totalorder %s14, 0
      %p76 = por %p74, %p75
      %p77 = scmp.ne.s32.totalorder %s66, %s69
      %p78 = scmp.eq.s32.totalorder %s19, 3
      %p79 = por %p77, %p78
      %p80 = scmp.ne.s32.totalorder %s69, %s70
      %p81 = scmp.eq.s32.totalorder %s19, 0
      %p82 = por %p80, %p81
      %p83 = scmp.ne.s32.totalorder %s69, %s70
      %p84 = scmp.eq.s32.totalorder %s20, 3
      %p85 = por %p83, %p84
      %p87 = scmp.ne.s32.totalorder %s70, %s86
      %p88 = scmp.eq.s32.totalorder %s20, 0
      %p89 = por %p87, %p88
      %s90 = ssub.s32 %s21, %s33
      %p91 = scmp.eq.s32.totalorder %s90, 0
      %s93 = sadd.s32 %s92, 1
      %s94 = scalar_select %p91, %s92, %s93
      %p97 = pneg %p91
      %p98 = scmp.eq.s32.totalorder %s14, 3
      %p99 = por %p97, %p98
      %p100 = scmp.ne.s32.totalorder %s92, %s95
      %p101 = scmp.eq.s32.totalorder %s14, 0
      %p102 = por %p100, %p101
      %p103 = scmp.ne.s32.totalorder %s92, %s95
      %p104 = scmp.eq.s32.totalorder %s19, 3
      %p105 = por %p103, %p104
      %p106 = scmp.ne.s32.totalorder %s95, %s96
      %p107 = scmp.eq.s32.totalorder %s19, 0
      %p108 = por %p106, %p107
      %p109 = scmp.ne.s32.totalorder %s95, %s96
      %p110 = scmp.eq.s32.totalorder %s20, 3
      %p111 = por %p109, %p110
      %p113 = scmp.ne.s32.totalorder %s96, %s112
      %p114 = scmp.eq.s32.totalorder %s20, 0
      %p115 = por %p113, %p114
      %p116 = scmp.le.s32.totalorder 1, %s14
      %p117 = scmp.lt.s32.totalorder %s14, 5
      %p118 = pnand %p116, %p117
      %p119 = pneg %p118
      // Predicated region
      $region9: #{_psnr_ycbcr_impl.1} parent=5 // pred_check
        _
      $region10: #{_psnr_ycbcr_impl.1} parent=5 // pred_check_branch
        %121 = sbr.rel (%p118) target = $region12
      $region11: #{_psnr_ycbcr_impl.1} parent=5 // pred_region
        %s122 = ssub.s32 %s14, 1
      $region12: #{_psnr_ycbcr_impl.1} parent=5 // pred_fallthru
        _
      %p123 = scmp.lt.s32.totalorder %s14, 4
      // Predicated region
      $region13: #{_psnr_ycbcr_impl.1} parent=5 // pred_check
        %p124 = pneg %p123
      $region14: #{_psnr_ycbcr_impl.1} parent=5 // pred_check_branch
        %126 = sbr.rel (%p124) target = $region16
      $region15: #{_psnr_ycbcr_impl.1} parent=5 // pred_region
        // Predicated region
        $region17: #{_psnr_ycbcr_impl.1} parent=15 // pred_check
          %p127 = pneg %p48
        $region18: #{_psnr_ycbcr_impl.1} parent=15 // pred_check_branch
          %129 = sbr.rel (%p127) target = $region20
        $region19: #{_psnr_ycbcr_impl.1} parent=15 // pred_region
          %s130 = sand.u32 %s38, 1
          %s131 = scalar_lea.sflag [#allocation3], %s130
          %s132 = sand.u32 %s38, 1
          %s133 = smul.addr %s132, 24
          %s134 = scalar_lea.vmem [#allocation2], %s133
          %136 = vsyncadd %s131, 0
          %s137 = smul.addr %s21, 6
          %s138 = sadd.s32 %s22, %s137
          %s139 = smul.addr %s138, 8
          %s140 = scalar_lea.hbm %s0, %s139
          %s141 = sshll.u32 %s140, 4
          %s142 = int_to_ptr.hbm [resolvable:$true] %s141
          %s143 = sshll.u32 %s134, 4
          %s144 = int_to_ptr.vmem [resolvable:$true] %s143
          %149 = dma.hbm_to_vmem [thread:$0]  %s142, 384, %s144, %s131, 256, 128, 8
        $region20: #{_psnr_ycbcr_impl.1} parent=15 // pred_fallthru
          _
        // Predicated region
        $region21: #{_psnr_ycbcr_impl.1} parent=15 // pred_check
          %p150 = pneg %p76
        $region22: #{_psnr_ycbcr_impl.1} parent=15 // pred_check_branch
          %152 = sbr.rel (%p150) target = $region24
        $region23: #{_psnr_ycbcr_impl.1} parent=15 // pred_region
          %s153 = sand.u32 %s66, 1
          %s154 = scalar_lea.sflag [#allocation5], %s153
          %s155 = sand.u32 %s66, 1
          %s156 = smul.addr %s155, 24
          %s157 = scalar_lea.vmem [#allocation4], %s156
          %159 = vsyncadd %s154, 0
          %s160 = smul.addr %s21, 6
          %s161 = sadd.s32 %s22, %s160
          %s162 = smul.addr %s161, 8
          %s163 = scalar_lea.hbm %s1, %s162
          %s164 = sshll.u32 %s163, 4
          %s165 = int_to_ptr.hbm [resolvable:$true] %s164
          %s166 = sshll.u32 %s157, 4
          %s167 = int_to_ptr.vmem [resolvable:$true] %s166
          %172 = dma.hbm_to_vmem [thread:$0]  %s165, 384, %s167, %s154, 256, 128, 8
        $region24: #{_psnr_ycbcr_impl.1} parent=15 // pred_fallthru
          _
      $region16: #{_psnr_ycbcr_impl.1} parent=5 // pred_fallthru
        _
      %p173 = scmp.le.s32.totalorder 1, %s14
      %p174 = scmp.lt.s32.totalorder %s14, 5
      %p175 = pnand %p173, %p174
      %p176 = pneg %p175
      // Predicated region
      $region25: #{_psnr_ycbcr_impl.1} parent=5 // pred_check
        _
      $region26: #{_psnr_ycbcr_impl.1} parent=5 // pred_check_branch
        %178 = sbr.rel (%p175) target = $region28
      $region27: #{_psnr_ycbcr_impl.1} parent=5 // pred_region
        %s179 = ssub.s32 %s14, 1
        %s180 = sand.u32 %s41, 1
        %s181 = scalar_lea.sflag [#allocation3], %s180
        %s182 = sand.u32 %s41, 1
        %s183 = smul.addr %s182, 24
        %s184 = scalar_lea.vmem [#allocation2], %s183
        // Predicated region
        $region29: #{_psnr_ycbcr_impl.1} parent=27 // pred_check
          %p185 = pneg %p54
        $region30: #{_psnr_ycbcr_impl.1} parent=27 // pred_check_branch
          %187 = sbr.rel (%p185) target = $region32
        $region31: #{_psnr_ycbcr_impl.1} parent=27 // pred_region
          %189 = dma.done %s181, 384
        $region32: #{_psnr_ycbcr_impl.1} parent=27 // pred_fallthru
          _
        %s190 = sand.u32 %s69, 1
        %s191 = scalar_lea.sflag [#allocation5], %s190
        %s192 = sand.u32 %s69, 1
        %s193 = smul.addr %s192, 24
        %s194 = scalar_lea.vmem [#allocation4], %s193
        // Predicated region
        $region33: #{_psnr_ycbcr_impl.1} parent=27 // pred_check
          %p195 = pneg %p82
        $region34: #{_psnr_ycbcr_impl.1} parent=27 // pred_check_branch
          %197 = sbr.rel (%p195) target = $region36
        $region35: #{_psnr_ycbcr_impl.1} parent=27 // pred_region
          %199 = dma.done %s191, 384
        $region36: #{_psnr_ycbcr_impl.1} parent=27 // pred_fallthru
          _
        %s200 = sand.u32 %s41, 1
        %s201 = scalar_lea.sflag [#allocation3], %s200
        %s202 = sand.u32 %s41, 1
        %s203 = smul.addr %s202, 24
        %s204 = scalar_lea.vmem [#allocation2], %s203
        %p205 = pneg %p54
        %p206 = pneg %p51
        %s207 = sand.u32 %s69, 1
        %s208 = scalar_lea.sflag [#allocation5], %s207
        %s209 = sand.u32 %s69, 1
        %s210 = smul.addr %s209, 24
        %s211 = scalar_lea.vmem [#allocation4], %s210
        %p212 = pneg %p82
        %p213 = pneg %p79
        %p214 = pneg %p108
        %p215 = pneg %p105
        %p216 = scmp.lt.s32.totalorder %s23, 1
        %s217 = scalar_select %p216, %s23, 1
        %s218 = smul.addr %s217, 8
        %s219 = scalar_lea.vmem %s2, %s218
        %p220 = scmp.lt.s32.totalorder %s23, 1
        %s221 = scalar_select %p220, %s23, 1
        %s222 = smul.addr %s221, 8
        %s223 = scalar_lea.vmem %s2, %s222
        %p224 = scmp.eq.s32.totalorder %s24, 0
        // Predicated region
        $region37: #{_psnr_ycbcr_impl.1} parent=27 // pred_check
          %p225 = pneg %p224
        $region38: #{_psnr_ycbcr_impl.1} parent=27 // pred_check_branch
          %227 = sbr.rel (%p225) target = $region40
        $region39: #{_psnr_ycbcr_impl.1} parent=27 // pred_region
          %vm228 = vcmask 130048
          %229 = vst.msk [vmem:[%s223] sm:$0xff] %vm228, 0.0
        $region40: #{_psnr_ycbcr_impl.1} parent=27 // pred_fallthru
          _
        %v230 = vlaneseq
        %v231 = vshrl.u32 %v230, 7
        %s232 = smul.u32 %s24, 8
        %v233 = vstv %s232
        %v234 = vadd.s32 %v231, %v233
        %vm235 = vcmp.ge.s32.totalorder %v234, 4
        %vm236 = vcmp.lt.s32.totalorder %v234, 12
        %vm237 = vmand %vm235, %vm236
        %v238 = vlaneseq
        %v239 = vand.u32 %v238, 127
        %vm240 = vcmp.ge.s32.totalorder %v239, 4
        %vm241 = vmand %vm237, %vm240
        %vm242 = vcmp.lt.s32.totalorder %v239, 12
        %vm243 = vmand %vm241, %vm242
        %v244 = vld [vmem:[%s184] sm:$0xff]
        %v245 = vld [vmem:[%s194] sm:$0xff]
        %v246 = vmul.f32 %v244, 255.0
        %v247 = vmax.f32 %v246, 0.0
        %v248 = vmin.f32 %v247, 255.0
        %v249 = vround.ne.pseudo %v248
        %v250 = vmul.f32 %v249, 0.003921569
        %v251 = vsub.f32 %v250, %v245
        %v252 = vmul.f32 %v251, 0.25678906
        %s253 = scalar_lea.vmem %s184, 8 [#allocation2]
        %v254 = vld [vmem:[%s253] sm:$0xff]
        %s255 = scalar_lea.vmem %s194, 8 [#allocation4]
        %v256 = vld [vmem:[%s255] sm:$0xff]
        %v257 = vmul.f32 %v254, 255.0
        %v258 = vmax.f32 %v257, 0.0
        %v259 = vmin.f32 %v258, 255.0
        %v260 = vround.ne.pseudo %v259
        %v261 = vmul.f32 %v260, 0.003921569
        %v262 = vsub.f32 %v261, %v256
        %v263 = vmul.f32 %v262, 0.50412893
        %v264 = vadd.f32 %v252, %v263
        %s265 = scalar_lea.vmem %s184, 16 [#allocation2]
        %v266 = vld [vmem:[%s265] sm:$0xff]
        %s267 = scalar_lea.vmem %s194, 16 [#allocation4]
        %v268 = vld [vmem:[%s267] sm:$0xff]
        %v269 = vmul.f32 %v266, 255.0
        %v270 = vmax.f32 %v269, 0.0
        %v271 = vmin.f32 %v270, 255.0
        %v272 = vround.ne.pseudo %v271
        %v273 = vmul.f32 %v272, 0.003921569
        %v274 = vsub.f32 %v273, %v268
        %v275 = vmul.f32 %v274, 0.09790625
        %v276 = vadd.f32 %v264, %v275
        %v277 = vmul.f32 %v276, %v276
        %v278 = vsel %vm243, %v277, 0.0
        %v279 = vld [vmem:[%s223] sm:$0xff]
        %v280 = vadd.f32 %v278, 0.0
        %v281 = vadd.f32 %v279, %v280
        %vm282 = vcmask 130048
        %283 = vst.msk [vmem:[%s223] sm:$0xff] %vm282, %v281
        %p284 = scmp.lt.s32.totalorder %s23, 1
        %s285 = scalar_select %p284, %s23, 1
        %s286 = smul.addr %s285, 8
        %s287 = scalar_lea.vmem %s2, %s286
        // Predicated region
        $region41: #{_psnr_ycbcr_impl.1} parent=27 // pred_check
          %p288 = pneg %p105
        $region42: #{_psnr_ycbcr_impl.1} parent=27 // pred_check_branch
          %290 = sbr.rel (%p288) target = $region44
        $region43: #{_psnr_ycbcr_impl.1} parent=27 // pred_region
          _
        $region44: #{_psnr_ycbcr_impl.1} parent=27 // pred_fallthru
          _
      $region28: #{_psnr_ycbcr_impl.1} parent=5 // pred_fallthru
        _
      %p291 = scmp.le.s32.totalorder 2, %s14
      // Predicated region
      $region45: #{_psnr_ycbcr_impl.1} parent=5 // pred_check
        %p292 = pneg %p291
      $region46: #{_psnr_ycbcr_impl.1} parent=5 // pred_check_branch
        %294 = sbr.rel (%p292) target = $region48
      $region47: #{_psnr_ycbcr_impl.1} parent=5 // pred_region
        %s295 = ssub.s32 %s14, 2
        // Predicated region
        $region49: #{_psnr_ycbcr_impl.1} parent=47 // pred_check
          %p296 = pneg %p111
        $region50: #{_psnr_ycbcr_impl.1} parent=47 // pred_check_branch
          %298 = sbr.rel (%p296) target = $region52
        $region51: #{_psnr_ycbcr_impl.1} parent=47 // pred_region
          %p299 = scmp.lt.s32.totalorder %s25, 1
          %s300 = scalar_select %p299, %s25, 1
          %s301 = smul.addr %s300, 8
          %s302 = scalar_lea.vmem %s2, %s301
        $region52: #{_psnr_ycbcr_impl.1} parent=47 // pred_fallthru
          _
      $region48: #{_psnr_ycbcr_impl.1} parent=5 // pred_fallthru
        _
    $region6: #{_psnr_ycbcr_impl.1} parent=1 // loop_footer
      %s18 = sadd.s32 1, %s14
    $region7: #{_psnr_ycbcr_impl.1} parent=1 // loop_footer_branch
      %13 = sbr.rel target = $region3
    $region8: #{_psnr_ycbcr_impl.1} parent=1 // loop_exit
      _
    %303 = vsyncpa [#allocation3], 1
    %s304 = scalar_lea.sflag [#allocation3], 1
    %305 = vsyncpa %s304, 1
    %306 = vsyncpa [#allocation5], 1
    %s307 = scalar_lea.sflag [#allocation5], 1
    %308 = vsyncpa %s307, 1

</llo_original>
